<compile_context>
chip_gen: v6e
topology: v6e:2x2x1
jax: 0.10.0
libtpu: 0.0.40
codegen_flags: <defaults>
</compile_context>

<pallas_src>
import functools

import jax
import jax.numpy as jnp
from jax.experimental import pallas as pl
from jax.experimental.pallas import tpu as pltpu

_LANE_TILE = 256  # batch-lane tile granularity: multiple of 128 lanes and of the
                  # 256-wide MXU on v6e/v7x (also fine for v5e's 128-wide MXU).


def _round_up(n: int, m: int) -> int:
    return ((n + m - 1) // m) * m


def _qnet_kernel(x_ref,
                 w1_ref, b1_ref,
                 w2_ref, b2_ref,
                 w3_ref, b3_ref,
                 w4_ref, b4_ref,
                 w5_ref, b5_ref,
                 out_ref):
    """Fused 5-layer MLP on one (features, batch_tile) tile, batch along lanes."""
    cdt = w1_ref.dtype              # MXU compute dtype (bf16 by default)
    x = x_ref[...]                  # (input_size, TB), already in compute dtype

    # superposition_layer + sigmoid
    h = jnp.dot(w1_ref[...], x, preferred_element_type=jnp.float32) + b1_ref[...]
    h = jax.nn.sigmoid(h)

    # entanglement_layer + tanh
    h = jnp.dot(w2_ref[...], h.astype(cdt), preferred_element_type=jnp.float32) + b2_ref[...]
    h = jnp.tanh(h)

    # measurement_layer + relu
    h = jnp.dot(w3_ref[...], h.astype(cdt), preferred_element_type=jnp.float32) + b3_ref[...]
    h = jnp.maximum(h, 0.0)

    # classical_layer + relu
    h = jnp.dot(w4_ref[...], h.astype(cdt), preferred_element_type=jnp.float32) + b4_ref[...]
    h = jnp.maximum(h, 0.0)

    # output_layer (no activation); lane-dense store (batch along lanes)
    o = jnp.dot(w5_ref[...], h.astype(cdt), preferred_element_type=jnp.float32) + b5_ref[...]
    out_ref[...] = o.astype(out_ref.dtype)


@functools.partial(jax.jit, static_argnames=("block_batch", "out_dtype"))
def quantum_enhanced_forward(x, params, *, block_batch=8192, out_dtype=jnp.float32):
    """Forward pass. x: (batch, input_size) f32; params from prepare_params()."""
    (w1, b1, w2, b2, w3, b3, w4, b4, w5, b5) = params
    batch, input_size = x.shape
    num_qubits = w1.shape[0]
    hidden_size = w3.shape[0]
    assert w1.shape == (num_qubits, input_size)
    assert w5.shape == (input_size, hidden_size)

    # Batch-in-lanes: (features, batch).  The compute-dtype cast is fused into the
    # transpose copy (one XLA pass); no standalone cast or pad pass over x.
    xt = x.T.astype(w1.dtype)                       # (input_size, batch)

    # --- batch (lane) tile size --------------------------------------------------
    block_batch = max(_LANE_TILE, _round_up(block_batch, _LANE_TILE))
    if batch > block_batch:
        tb = block_batch
    else:
        # Keep >=2 grid steps when possible so "parallel" can use both v7x cores.
        half = _round_up(-(-batch // 2), _LANE_TILE)
        tb = half if half < batch else batch        # tb == full batch is always legal
    grid = (pl.cdiv(batch, tb),)

    def resident(arr):
        # Full-array block + constant index_map -> fetched once, VMEM-resident.
        return pl.BlockSpec(arr.shape, lambda i: (0, 0))

    weights = (w1, w2, w3, w4, w5)
    biases = (b1, b2, b3, b4, b5)

    in_specs = [pl.BlockSpec((input_size, tb), lambda i: (0, i))]
    operands = [xt]
    for w, b in zip(weights, biases):
        in_specs += [resident(w), resident(b)]
        operands += [w, b]

    out_specs = pl.BlockSpec((input_size, tb), lambda i: (0, i))
    out_shape = jax.ShapeDtypeStruct((input_size, batch), out_dtype)

    flops = 2 * batch * (input_size * num_qubits + num_qubits * num_qubits
                         + num_qubits * hidden_size + hidden_size * hidden_size
                         + hidden_size * input_size)
    param_bytes = sum(int(a.size) * a.dtype.itemsize for a in (*weights, *biases))
    cost = pl.CostEstimate(
        flops=flops,
        transcendentals=2 * batch * num_qubits,      # sigmoid + tanh
        bytes_accessed=batch * input_size * (xt.dtype.itemsize
                                             + jnp.dtype(out_dtype).itemsize)
        + param_bytes,
    )

    # VMEM budget: double-buffered in/out tiles + f32 intermediates + headroom,
    # clamped to [32, 48] MiB (safe on v5e/v6e/v7x; raises v5e's 16 MiB default).
    feat_max = max(input_size, num_qubits, hidden_size)
    vmem_est = (2 * input_size * tb * xt.dtype.itemsize
                + 2 * input_size * tb * jnp.dtype(out_dtype).itemsize
                + 6 * feat_max * tb * 4
                + param_bytes + (1 << 20))
    vmem_limit = min(max(2 * vmem_est, 32 * 1024 * 1024), 48 * 1024 * 1024)

    out_t = pl.pallas_call(
        _qnet_kernel,
        out_shape=out_shape,
        grid=grid,
        in_specs=in_specs,
        out_specs=out_specs,
        compiler_params=pltpu.CompilerParams(
            dimension_semantics=("parallel",),
            vmem_limit_bytes=vmem_limit),
        cost_estimate=cost,
    )(*operands)

    return out_t.T                                   # (batch, input_size)


def init_params(key, input_size, hidden_size, num_qubits):
    """Synthetic parameters in native PyTorch nn.Linear layout: W (out,in), b (out,)."""
    def linear(k, fan_in, fan_out):
        kw, kb = jax.random.split(k)
        bound = 1.0 / float(fan_in) ** 0.5
        w = jax.random.uniform(kw, (fan_out, fan_in), jnp.float32, -bound, bound)
        b = jax.random.uniform(kb, (fan_out,), jnp.float32, -bound, bound)
        return w, b

    keys = jax.random.split(key, 5)
    w1, b1 = linear(keys[0], input_size, num_qubits)    # superposition_layer
    w2, b2 = linear(keys[1], num_qubits, num_qubits)    # entanglement_layer
    w3, b3 = linear(keys[2], num_qubits, hidden_size)   # measurement_layer
    w4, b4 = linear(keys[3], hidden_size, hidden_size)  # classical_layer
    w5, b5 = linear(keys[4], hidden_size, input_size)   # output_layer
    return (w1, b1, w2, b2, w3, b3, w4, b4, w5, b5)


def prepare_params(torch_params, compute_dtype=jnp.bfloat16):
    """One-time packing (outside jit): W kept in (out,in) layout as the MXU compute
    dtype; bias reshaped to (out,1) f32 so it broadcasts along the batch-lane axis.
    Use compute_dtype=jnp.float32 for a full-f32 parity path."""
    out = []
    for i in range(0, 10, 2):
        w, b = torch_params[i], torch_params[i + 1]
        out.append(jnp.asarray(w, compute_dtype))
        out.append(jnp.asarray(b, jnp.float32).reshape(-1, 1))
    return tuple(out)


def reference_forward(x, torch_params):
    """Pure-JAX f32 reference of the PyTorch forward, for the correctness check."""
    (w1, b1, w2, b2, w3, b3, w4, b4, w5, b5) = torch_params
    h = jax.nn.sigmoid(x @ w1.T + b1)
    h = jnp.tanh(h @ w2.T + b2)
    h = jnp.maximum(h @ w3.T + b3, 0.0)
    h = jnp.maximum(h @ w4.T + b4, 0.0)
    return h @ w5.T + b5


if __name__ == "__main__":
    input_size, hidden_size, num_qubits = 16, 32, 8

    key = jax.random.PRNGKey(0)
    k_p, k_x1, k_x2 = jax.random.split(key, 3)

    torch_params = init_params(k_p, input_size, hidden_size, num_qubits)
    kernel_params = prepare_params(torch_params)         # bf16 weights, cast once

    # Case 1: small batch -> single block whose lane extent equals the full batch.
    x1 = jax.random.normal(k_x1, (60, input_size), dtype=jnp.float32)
    out1 = jax.block_until_ready(quantum_enhanced_forward(x1, kernel_params))
    ref1 = reference_forward(x1, torch_params)
    assert out1.shape == (60, input_size)
    err1 = float(jnp.max(jnp.abs(out1 - ref1)))
    assert jnp.allclose(out1, ref1, atol=5e-2, rtol=5e-2), f"max abs err {err1}"

    # Case 2: multi-step batch grid with a partial trailing block (production path).
    x2 = jax.random.normal(k_x2, (700, input_size), dtype=jnp.float32)
    out2 = jax.block_until_ready(
        quantum_enhanced_forward(x2, kernel_params, block_batch=256))
    ref2 = reference_forward(x2, torch_params)
    assert out2.shape == (700, input_size)
    err2 = float(jnp.max(jnp.abs(out2 - ref2)))
    assert jnp.allclose(out2, ref2, atol=5e-2, rtol=5e-2), f"max abs err {err2}"

    print("KERNEL_OK")
</pallas_src>

<mosaic_0001>
module attributes {stable_mosaic.version = 11 : i64} {
  func.func @_qnet_kernel(%arg0: i32, %arg1: memref<16x60xbf16, #tpu.memory_space<vmem>>, %arg2: memref<8x16xbf16, #tpu.memory_space<vmem>>, %arg3: memref<8x1xf32, #tpu.memory_space<vmem>>, %arg4: memref<8x8xbf16, #tpu.memory_space<vmem>>, %arg5: memref<8x1xf32, #tpu.memory_space<vmem>>, %arg6: memref<32x8xbf16, #tpu.memory_space<vmem>>, %arg7: memref<32x1xf32, #tpu.memory_space<vmem>>, %arg8: memref<32x32xbf16, #tpu.memory_space<vmem>>, %arg9: memref<32x1xf32, #tpu.memory_space<vmem>>, %arg10: memref<16x32xbf16, #tpu.memory_space<vmem>>, %arg11: memref<16x1xf32, #tpu.memory_space<vmem>>, %arg12: memref<16x60xf32, #tpu.memory_space<vmem>>) attributes {dimension_semantics = [#tpu.dimension_semantics<parallel>], iteration_bounds = array<i64: 1>, scalar_prefetch = 0 : i64, scratch_operands = 0 : i64, tpu.core_type = #tpu.core_type<tc>, window_params = [{transform_indices = @transform_0, window_bounds = array<i64: 16, 60>}, {pipeline_mode = #tpu.pipeline_mode<synchronous>, transform_indices = @transform_1, window_bounds = array<i64: 8, 16>}, {pipeline_mode = #tpu.pipeline_mode<synchronous>, transform_indices = @transform_2, window_bounds = array<i64: 8, 1>}, {pipeline_mode = #tpu.pipeline_mode<synchronous>, transform_indices = @transform_3, window_bounds = array<i64: 8, 8>}, {pipeline_mode = #tpu.pipeline_mode<synchronous>, transform_indices = @transform_4, window_bounds = array<i64: 8, 1>}, {pipeline_mode = #tpu.pipeline_mode<synchronous>, transform_indices = @transform_5, window_bounds = array<i64: 32, 8>}, {pipeline_mode = #tpu.pipeline_mode<synchronous>, transform_indices = @transform_6, window_bounds = array<i64: 32, 1>}, {pipeline_mode = #tpu.pipeline_mode<synchronous>, transform_indices = @transform_7, window_bounds = array<i64: 32, 32>}, {pipeline_mode = #tpu.pipeline_mode<synchronous>, transform_indices = @transform_8, window_bounds = array<i64: 32, 1>}, {pipeline_mode = #tpu.pipeline_mode<synchronous>, transform_indices = @transform_9, window_bounds = array<i64: 16, 32>}, {pipeline_mode = #tpu.pipeline_mode<synchronous>, transform_indices = @transform_10, window_bounds = array<i64: 16, 1>}, {transform_indices = @transform_11, window_bounds = array<i64: 16, 60>}]} {
    %c0 = arith.constant 0 : index
    %c0_0 = arith.constant 0 : index
    %0 = vector.load %arg1[%c0, %c0_0] : memref<16x60xbf16, #tpu.memory_space<vmem>>, vector<16x60xbf16>
    %c0_1 = arith.constant 0 : index
    %c0_2 = arith.constant 0 : index
    %1 = vector.load %arg2[%c0_1, %c0_2] : memref<8x16xbf16, #tpu.memory_space<vmem>>, vector<8x16xbf16>
    %cst = arith.constant dense<0.000000e+00> : vector<8x60xf32>
    %2 = tpu.matmul %1, %0, %cst {dimension_numbers = #tpu.dot_dimension_numbers<[1], [0], [0], [1], [0, 0, 1, 1], [], []>} : vector<8x16xbf16>, vector<16x60xbf16>, vector<8x60xf32> -> vector<8x60xf32>
    %c0_3 = arith.constant 0 : index
    %c0_4 = arith.constant 0 : index
    %3 = vector.load %arg3[%c0_3, %c0_4] : memref<8x1xf32, #tpu.memory_space<vmem>>, vector<8x1xf32>
    %4 = vector.broadcast %3 : vector<8x1xf32> to vector<8x60xf32>
    %5 = arith.addf %2, %4 : vector<8x60xf32>
    %6 = arith.negf %5 : vector<8x60xf32>
    %7 = math.exp %6 : vector<8x60xf32>
    %cst_5 = arith.constant 1.000000e+00 : f32
    %8 = vector.broadcast %cst_5 : f32 to vector<8x60xf32>
    %9 = arith.addf %8, %7 : vector<8x60xf32>
    %10 = arith.divf %8, %9 : vector<8x60xf32>
    %c0_6 = arith.constant 0 : index
    %c0_7 = arith.constant 0 : index
    %11 = vector.load %arg4[%c0_6, %c0_7] : memref<8x8xbf16, #tpu.memory_space<vmem>>, vector<8x8xbf16>
    %12 = arith.truncf %10 : vector<8x60xf32> to vector<8x60xbf16>
    %cst_8 = arith.constant dense<0.000000e+00> : vector<8x60xf32>
    %13 = tpu.matmul %11, %12, %cst_8 {dimension_numbers = #tpu.dot_dimension_numbers<[1], [0], [0], [1], [0, 0, 1, 1], [], []>} : vector<8x8xbf16>, vector<8x60xbf16>, vector<8x60xf32> -> vector<8x60xf32>
    %c0_9 = arith.constant 0 : index
    %c0_10 = arith.constant 0 : index
    %14 = vector.load %arg5[%c0_9, %c0_10] : memref<8x1xf32, #tpu.memory_space<vmem>>, vector<8x1xf32>
    %15 = vector.broadcast %14 : vector<8x1xf32> to vector<8x60xf32>
    %16 = arith.addf %13, %15 : vector<8x60xf32>
    %17 = math.tanh %16 : vector<8x60xf32>
    %c0_11 = arith.constant 0 : index
    %c0_12 = arith.constant 0 : index
    %18 = vector.load %arg6[%c0_11, %c0_12] : memref<32x8xbf16, #tpu.memory_space<vmem>>, vector<32x8xbf16>
    %19 = arith.truncf %17 : vector<8x60xf32> to vector<8x60xbf16>
    %cst_13 = arith.constant dense<0.000000e+00> : vector<32x60xf32>
    %20 = tpu.matmul %18, %19, %cst_13 {dimension_numbers = #tpu.dot_dimension_numbers<[1], [0], [0], [1], [0, 0, 1, 1], [], []>} : vector<32x8xbf16>, vector<8x60xbf16>, vector<32x60xf32> -> vector<32x60xf32>
    %c0_14 = arith.constant 0 : index
    %c0_15 = arith.constant 0 : index
    %21 = vector.load %arg7[%c0_14, %c0_15] : memref<32x1xf32, #tpu.memory_space<vmem>>, vector<32x1xf32>
    %22 = vector.broadcast %21 : vector<32x1xf32> to vector<32x60xf32>
    %23 = arith.addf %20, %22 : vector<32x60xf32>
    %cst_16 = arith.constant 0.000000e+00 : f32
    %24 = vector.broadcast %cst_16 : f32 to vector<32x60xf32>
    %25 = arith.maximumf %23, %24 : vector<32x60xf32>
    %c0_17 = arith.constant 0 : index
    %c0_18 = arith.constant 0 : index
    %26 = vector.load %arg8[%c0_17, %c0_18] : memref<32x32xbf16, #tpu.memory_space<vmem>>, vector<32x32xbf16>
    %27 = arith.truncf %25 : vector<32x60xf32> to vector<32x60xbf16>
    %cst_19 = arith.constant dense<0.000000e+00> : vector<32x60xf32>
    %28 = tpu.matmul %26, %27, %cst_19 {dimension_numbers = #tpu.dot_dimension_numbers<[1], [0], [0], [1], [0, 0, 1, 1], [], []>} : vector<32x32xbf16>, vector<32x60xbf16>, vector<32x60xf32> -> vector<32x60xf32>
    %c0_20 = arith.constant 0 : index
    %c0_21 = arith.constant 0 : index
    %29 = vector.load %arg9[%c0_20, %c0_21] : memref<32x1xf32, #tpu.memory_space<vmem>>, vector<32x1xf32>
    %30 = vector.broadcast %29 : vector<32x1xf32> to vector<32x60xf32>
    %31 = arith.addf %28, %30 : vector<32x60xf32>
    %cst_22 = arith.constant 0.000000e+00 : f32
    %32 = vector.broadcast %cst_22 : f32 to vector<32x60xf32>
    %33 = arith.maximumf %31, %32 : vector<32x60xf32>
    %c0_23 = arith.constant 0 : index
    %c0_24 = arith.constant 0 : index
    %34 = vector.load %arg10[%c0_23, %c0_24] : memref<16x32xbf16, #tpu.memory_space<vmem>>, vector<16x32xbf16>
    %35 = arith.truncf %33 : vector<32x60xf32> to vector<32x60xbf16>
    %cst_25 = arith.constant dense<0.000000e+00> : vector<16x60xf32>
    %36 = tpu.matmul %34, %35, %cst_25 {dimension_numbers = #tpu.dot_dimension_numbers<[1], [0], [0], [1], [0, 0, 1, 1], [], []>} : vector<16x32xbf16>, vector<32x60xbf16>, vector<16x60xf32> -> vector<16x60xf32>
    %c0_26 = arith.constant 0 : index
    %c0_27 = arith.constant 0 : index
    %37 = vector.load %arg11[%c0_26, %c0_27] : memref<16x1xf32, #tpu.memory_space<vmem>>, vector<16x1xf32>
    %38 = vector.broadcast %37 : vector<16x1xf32> to vector<16x60xf32>
    %39 = arith.addf %36, %38 : vector<16x60xf32>
    %c0_28 = arith.constant 0 : index
    %c0_29 = arith.constant 0 : index
    %40 = vector.load %arg12[%c0_28, %c0_29] : memref<16x60xf32, #tpu.memory_space<vmem>>, vector<16x60xf32>
    tpu.vector_store %arg12[%c0_28, %c0_29], %39 {strides = array<i32>} : memref<16x60xf32, #tpu.memory_space<vmem>>, vector<16x60xf32>,
    return
  }
  func.func @transform_0(%arg0: i32) -> (i32, i32) {
    %c0_i32 = arith.constant 0 : i32
    %c0_i32_0 = arith.constant 0 : i32
    return %c0_i32, %arg0 : i32, i32
  }
  func.func @transform_1(%arg0: i32) -> (i32, i32) {
    %c0_i32 = arith.constant 0 : i32
    %c0_i32_0 = arith.constant 0 : i32
    %c0_i32_1 = arith.constant 0 : i32
    return %c0_i32, %c0_i32_0 : i32, i32
  }
  func.func @transform_2(%arg0: i32) -> (i32, i32) {
    %c0_i32 = arith.constant 0 : i32
    %c0_i32_0 = arith.constant 0 : i32
    %c0_i32_1 = arith.constant 0 : i32
    return %c0_i32, %c0_i32_0 : i32, i32
  }
  func.func @transform_3(%arg0: i32) -> (i32, i32) {
    %c0_i32 = arith.constant 0 : i32
    %c0_i32_0 = arith.constant 0 : i32
    %c0_i32_1 = arith.constant 0 : i32
    return %c0_i32, %c0_i32_0 : i32, i32
  }
  func.func @transform_4(%arg0: i32) -> (i32, i32) {
    %c0_i32 = arith.constant 0 : i32
    %c0_i32_0 = arith.constant 0 : i32
    %c0_i32_1 = arith.constant 0 : i32
    return %c0_i32, %c0_i32_0 : i32, i32
  }
  func.func @transform_5(%arg0: i32) -> (i32, i32) {
    %c0_i32 = arith.constant 0 : i32
    %c0_i32_0 = arith.constant 0 : i32
    %c0_i32_1 = arith.constant 0 : i32
    return %c0_i32, %c0_i32_0 : i32, i32
  }
  func.func @transform_6(%arg0: i32) -> (i32, i32) {
    %c0_i32 = arith.constant 0 : i32
    %c0_i32_0 = arith.constant 0 : i32
    %c0_i32_1 = arith.constant 0 : i32
    return %c0_i32, %c0_i32_0 : i32, i32
  }
  func.func @transform_7(%arg0: i32) -> (i32, i32) {
    %c0_i32 = arith.constant 0 : i32
    %c0_i32_0 = arith.constant 0 : i32
    %c0_i32_1 = arith.constant 0 : i32
    return %c0_i32, %c0_i32_0 : i32, i32
  }
  func.func @transform_8(%arg0: i32) -> (i32, i32) {
    %c0_i32 = arith.constant 0 : i32
    %c0_i32_0 = arith.constant 0 : i32
    %c0_i32_1 = arith.constant 0 : i32
    return %c0_i32, %c0_i32_0 : i32, i32
  }
  func.func @transform_9(%arg0: i32) -> (i32, i32) {
    %c0_i32 = arith.constant 0 : i32
    %c0_i32_0 = arith.constant 0 : i32
    %c0_i32_1 = arith.constant 0 : i32
    return %c0_i32, %c0_i32_0 : i32, i32
  }
  func.func @transform_10(%arg0: i32) -> (i32, i32) {
    %c0_i32 = arith.constant 0 : i32
    %c0_i32_0 = arith.constant 0 : i32
    %c0_i32_1 = arith.constant 0 : i32
    return %c0_i32, %c0_i32_0 : i32, i32
  }
  func.func @transform_11(%arg0: i32) -> (i32, i32) {
    %c0_i32 = arith.constant 0 : i32
    %c0_i32_0 = arith.constant 0 : i32
    return %c0_i32, %arg0 : i32, i32
  }
}

</mosaic_0001>

<llo_original>
// kernel: quantum_enhanced_forward.1
$region0: #{quantum_enhanced_forward.1}
  #allocation0 [shape = 'u32[]', space=smem, size = 0x4, offset = 0x4, fixed_abs, tag = 'smem constant byte address 0x4 - core index']
  #allocation1 [shape = 'u32[144,128]{1,0:T(1,128)}', space=vmem, size = 0x12000, scoped, tag = 'internal scratch']
  %s0 = inlined_call_operand.vmem [shape: bf16[16,60], index: 0, kind: input, shape index: {}]
  %s1 = inlined_call_operand.vmem [shape: bf16[8,16], index: 1, kind: input, shape index: {}]
  %s2 = inlined_call_operand.vmem [shape: f32[8,1], index: 2, kind: input, shape index: {}]
  %s3 = inlined_call_operand.vmem [shape: bf16[8,8], index: 3, kind: input, shape index: {}]
  %s4 = inlined_call_operand.vmem [shape: f32[8,1], index: 4, kind: input, shape index: {}]
  %s5 = inlined_call_operand.vmem [shape: bf16[32,8], index: 5, kind: input, shape index: {}]
  %s6 = inlined_call_operand.vmem [shape: f32[32,1], index: 6, kind: input, shape index: {}]
  %s7 = inlined_call_operand.vmem [shape: bf16[32,32], index: 7, kind: input, shape index: {}]
  %s8 = inlined_call_operand.vmem [shape: f32[32,1], index: 8, kind: input, shape index: {}]
  %s9 = inlined_call_operand.vmem [shape: bf16[16,32], index: 9, kind: input, shape index: {}]
  %s10 = inlined_call_operand.vmem [shape: f32[16,1], index: 10, kind: input, shape index: {}]
  %s11 = inlined_call_operand.hbm [shape: f32[16,60], index: 11, kind: output, shape index: {}]
  %s12 = sld [smem:[#allocation0]]
  $region54: #{quantum_enhanced_forward.1} parent=0
    _
  %s14 = ssub.s32 1, %s12
  %s15 = scalar_select 0, %s14, %s12
  $region1: #{quantum_enhanced_forward.1} parent=0
    #allocation2 [shape = 'u8[8192]{0}', space=vmem, size = 0x2000, scoped, tag = 'output window, operand 0, single buffered']
    #allocation3 [shape = 's32[1]{0}', space=sflag, size = 0x4, scoped, tag = 'scoped memory for quantum_enhanced_forward.1']
    %16 = vsyncpa [#allocation3], 0
    // Predicated region
    $region2: #{quantum_enhanced_forward.1} parent=1 // pred_check
      _
    $region3: #{quantum_enhanced_forward.1} parent=1 // pred_check_branch
      %18 = sbr.rel (0) target = $region5
    $region4: #{quantum_enhanced_forward.1} parent=1 // pred_region
      _
    $region5: #{quantum_enhanced_forward.1} parent=1 // pred_fallthru
      _
    // Predicated region
    $region6: #{quantum_enhanced_forward.1} parent=1 // pred_check
      _
    $region7: #{quantum_enhanced_forward.1} parent=1 // pred_check_branch
      %20 = sbr.rel (0) target = $region9
    $region8: #{quantum_enhanced_forward.1} parent=1 // pred_region
      _
    $region9: #{quantum_enhanced_forward.1} parent=1 // pred_fallthru
      _
    // Predicated region
    $region10: #{quantum_enhanced_forward.1} parent=1 // pred_check
      _
    $region11: #{quantum_enhanced_forward.1} parent=1 // pred_check_branch
      %22 = sbr.rel (0) target = $region13
    $region12: #{quantum_enhanced_forward.1} parent=1 // pred_region
      _
    $region13: #{quantum_enhanced_forward.1} parent=1 // pred_fallthru
      _
    // Predicated region
    $region14: #{quantum_enhanced_forward.1} parent=1 // pred_check
      _
    $region15: #{quantum_enhanced_forward.1} parent=1 // pred_check_branch
      %24 = sbr.rel (0) target = $region17
    $region16: #{quantum_enhanced_forward.1} parent=1 // pred_region
      _
    $region17: #{quantum_enhanced_forward.1} parent=1 // pred_fallthru
      _
    // Predicated region
    $region18: #{quantum_enhanced_forward.1} parent=1 // pred_check
      _
    $region19: #{quantum_enhanced_forward.1} parent=1 // pred_check_branch
      %26 = sbr.rel (0) target = $region21
    $region20: #{quantum_enhanced_forward.1} parent=1 // pred_region
      _
    $region21: #{quantum_enhanced_forward.1} parent=1 // pred_fallthru
      _
    // Predicated region
    $region22: #{quantum_enhanced_forward.1} parent=1 // pred_check
      _
    $region23: #{quantum_enhanced_forward.1} parent=1 // pred_check_branch
      %28 = sbr.rel (0) target = $region25
    $region24: #{quantum_enhanced_forward.1} parent=1 // pred_region
      _
    $region25: #{quantum_enhanced_forward.1} parent=1 // pred_fallthru
      _
    // Predicated region
    $region26: #{quantum_enhanced_forward.1} parent=1 // pred_check
      _
    $region27: #{quantum_enhanced_forward.1} parent=1 // pred_check_branch
      %30 = sbr.rel (0) target = $region29
    $region28: #{quantum_enhanced_forward.1} parent=1 // pred_region
      _
    $region29: #{quantum_enhanced_forward.1} parent=1 // pred_fallthru
      _
    // Predicated region
    $region30: #{quantum_enhanced_forward.1} parent=1 // pred_check
      _
    $region31: #{quantum_enhanced_forward.1} parent=1 // pred_check_branch
      %32 = sbr.rel (0) target = $region33
    $region32: #{quantum_enhanced_forward.1} parent=1 // pred_region
      _
    $region33: #{quantum_enhanced_forward.1} parent=1 // pred_fallthru
      _
    // Predicated region
    $region34: #{quantum_enhanced_forward.1} parent=1 // pred_check
      _
    $region35: #{quantum_enhanced_forward.1} parent=1 // pred_check_branch
      %34 = sbr.rel (0) target = $region37
    $region36: #{quantum_enhanced_forward.1} parent=1 // pred_region
      _
    $region37: #{quantum_enhanced_forward.1} parent=1 // pred_fallthru
      _
    // Predicated region
    $region38: #{quantum_enhanced_forward.1} parent=1 // pred_check
      _
    $region39: #{quantum_enhanced_forward.1} parent=1 // pred_check_branch
      %36 = sbr.rel (0) target = $region41
    $region40: #{quantum_enhanced_forward.1} parent=1 // pred_region
      _
    $region41: #{quantum_enhanced_forward.1} parent=1 // pred_fallthru
      _
    // Predicated region
    $region42: #{quantum_enhanced_forward.1} parent=1 // pred_check
      _
    $region43: #{quantum_enhanced_forward.1} parent=1 // pred_check_branch
      %38 = sbr.rel (0) target = $region45
    $region44: #{quantum_enhanced_forward.1} parent=1 // pred_region
      _
    $region45: #{quantum_enhanced_forward.1} parent=1 // pred_fallthru
      _
    %v40 = vld [vmem:[%s0] sm:$0xf]
    %v41 = vld [vmem:[%s0 + $0x4] sm:$0xf]
    %v42 = vld [vmem:[%s1] sm:$0xf]
    %v43 = vld [vmem:[%s2] sm:$0xff]
    %45 = vset.pattern.permute.xlu0 0
    %46 = vperm.xlu0 %45, %v43
    %v47 = vpop.permute.xlu0 %46
    %v51 = vunpack.c.l.b16 %v40
    %v52 = vunpack.c.l.b16 %v41
    %v53 = vpack.c.b16 %v52, %v51
    %vm55 = vcmask 130048
    %v57 = vsel %vm55, %v42, 0
    %59 = vmatprep.subr.bf16.mxu0 0
    %60 = vmatpush1.bf16.msra.mxu0 0
    %61 = vmatprep.subr.bf16.mxu0 0
    %62 = vmatpush1.bf16.msra.mxu0 0
    %63 = vmatprep.subr.bf16.mxu0 0
    %64 = vmatpush1.bf16.msra.mxu0 0
    %65 = vmatprep.subr.bf16.mxu0 0
    %66 = vmatpush1.bf16.msra.mxu0 0
    %67 = vmatprep.subr.bf16.mxu0 0
    %68 = vmatpush1.bf16.msra.mxu0 0
    %69 = vmatprep.subr.bf16.mxu0 0
    %70 = vmatpush1.bf16.msra.mxu0 0
    %71 = vmatprep.subr.bf16.mxu0 0
    %72 = vmatpush1.bf16.msra.mxu0 0
    %73 = vmatprep.subr.bf16.mxu0 0
    %74 = vmatpush1.bf16.msra.mxu0 %v53
    %75 = vmatprep.subr.bf16.mxu0 0
    %76 = vmatpush2.bf16.msra.mxu0 0
    %77 = vmatprep.subr.bf16.mxu0 0
    %78 = vmatpush2.bf16.msra.mxu0 0
    %79 = vmatprep.subr.bf16.mxu0 0
    %80 = vmatpush2.bf16.msra.mxu0 0
    %81 = vmatprep.subr.bf16.mxu0 0
    %82 = vmatpush2.bf16.msra.mxu0 0
    %83 = vmatprep.subr.bf16.mxu0 0
    %84 = vmatpush2.bf16.msra.mxu0 0
    %85 = vmatprep.subr.bf16.mxu0 0
    %86 = vmatpush2.bf16.msra.mxu0 0
    %87 = vmatprep.subr.bf16.mxu0 0
    %88 = vmatpush2.bf16.msra.mxu0 0
    %89 = vmatprep.subr.bf16.mxu0 0
    %90 = vmatpush2.bf16.msra.mxu0 0
    %91 = vmatprep.mubr.bf16.mxu0 0
    %92 = vmatmul.mubr.bf16.gmra.mxu0 %v57
    %v93 = vpop.f32.mrf.mxu0
    %v94 = vadd.f32 %v47, %v93
    %v95 = vpop.f32.mrf.mxu0
    %v96 = vpop.f32.mrf.mxu0
    %v97 = vpop.f32.mrf.mxu0
    %98 = vdwg.mxu0
    %v99 = vxor.u32 %v94, 2147483648
    %v100 = vmul.f32 %v99, 1.442695
    %v101 = vpow.pop %v100
    %v102 = vadd.f32 %v101, 1.0
    %v103 = vrcp.pop %v102
    %v104 = vmul.f32 1.0, %v103
    %v105 = vld [vmem:[%s3] sm:$0xf]
    %v106 = vpack.c.bf16 %v104, %v104
    %v107 = vld [vmem:[%s4] sm:$0xff]
    %109 = vset.pattern.permute.xlu0 0
    %110 = vperm.xlu0 %109, %v107
    %v111 = vpop.permute.xlu0 %110
    %vm113 = vcmask 64512
    %v115 = vsel %vm113, %v105, 0
    %vm117 = vcmask 1043456
    %v119 = vsel %vm117, %v106, 0
    %121 = vmatprep.subr.bf16.mxu0 0
    %122 = vmatpush1.bf16.msra.mxu0 0
    %123 = vmatprep.subr.bf16.mxu0 0
    %124 = vmatpush1.bf16.msra.mxu0 0
    %125 = vmatprep.subr.bf16.mxu0 0
    %126 = vmatpush1.bf16.msra.mxu0 0
    %127 = vmatprep.subr.bf16.mxu0 0
    %128 = vmatpush1.bf16.msra.mxu0 0
    %129 = vmatprep.subr.bf16.mxu0 0
    %130 = vmatpush1.bf16.msra.mxu0 0
    %131 = vmatprep.subr.bf16.mxu0 0
    %132 = vmatpush1.bf16.msra.mxu0 0
    %133 = vmatprep.subr.bf16.mxu0 0
    %134 = vmatpush1.bf16.msra.mxu0 0
    %135 = vmatprep.subr.bf16.mxu0 0
    %136 = vmatpush1.bf16.msra.mxu0 %v119
    %137 = vmatprep.subr.bf16.mxu0 0
    %138 = vmatpush2.bf16.msra.mxu0 0
    %139 = vmatprep.subr.bf16.mxu0 0
    %140 = vmatpush2.bf16.msra.mxu0 0
    %141 = vmatprep.subr.bf16.mxu0 0
    %142 = vmatpush2.bf16.msra.mxu0 0
    %143 = vmatprep.subr.bf16.mxu0 0
    %144 = vmatpush2.bf16.msra.mxu0 0
    %145 = vmatprep.subr.bf16.mxu0 0
    %146 = vmatpush2.bf16.msra.mxu0 0
    %147 = vmatprep.subr.bf16.mxu0 0
    %148 = vmatpush2.bf16.msra.mxu0 0
    %149 = vmatprep.subr.bf16.mxu0 0
    %150 = vmatpush2.bf16.msra.mxu0 0
    %151 = vmatprep.subr.bf16.mxu0 0
    %152 = vmatpush2.bf16.msra.mxu0 0
    %153 = vmatprep.mubr.bf16.mxu0 0
    %154 = vmatmul.mubr.bf16.gmra.mxu0 %v115
    %v155 = vpop.f32.mrf.mxu0
    %v156 = vadd.f32 %v111, %v155
    %v157 = vpop.f32.mrf.mxu0
    %v158 = vpop.f32.mrf.mxu0
    %v159 = vpop.f32.mrf.mxu0
    %160 = vdwg.mxu0
    %v161 = vtanh.pop %v156
    %v162 = vld [vmem:[%s5] sm:$0xf]
    %v163 = vld [vmem:[%s5 + $0x4] sm:$0xf]
    %v164 = vld [vmem:[%s5 + $0x8] sm:$0xf]
    %v165 = vld [vmem:[%s5 + $0xc] sm:$0xf]
    %v166 = vpack.c.bf16 %v161, %v161
    %v167 = vld [vmem:[%s6] sm:$0xff]
    %v168 = vld [vmem:[%s6 + $0x8] sm:$0xff]
    %v169 = vld [vmem:[%s6 + $0x10] sm:$0xff]
    %v170 = vld [vmem:[%s6 + $0x18] sm:$0xff]
    %172 = vset.pattern.permute.xlu0 0
    %173 = vperm.xlu0 %172, %v167
    %v174 = vpop.permute.xlu0 %173
    %177 = vset.pattern.permute.xlu0 0
    %178 = vperm.xlu0 %177, %v168
    %v179 = vpop.permute.xlu0 %178
    %182 = vset.pattern.permute.xlu0 0
    %183 = vperm.xlu0 %182, %v169
    %v184 = vpop.permute.xlu0 %183
    %187 = vset.pattern.permute.xlu0 0
    %188 = vperm.xlu0 %187, %v170
    %v189 = vpop.permute.xlu0 %188
    %v195 = vunpack.c.l.b16 %v162
    %v196 = vunpack.c.l.b16 %v163
    %v197 = vunpack.c.l.b16 %v164
    %v198 = vunpack.c.l.b16 %v165
    %v199 = vpack.c.b16 %v196, %v195
    %v200 = vpack.c.b16 %v198, %v197
    %v202 = vsel %vm113, %v199, 0
    %v205 = vsel %vm113, %v200, 0
    %v208 = vsel %vm117, %v166, 0
    %210 = vmatprep.subr.bf16.mxu0 0
    %211 = vmatpush1.bf16.msra.mxu0 0
    %212 = vmatprep.subr.bf16.mxu0 0
    %213 = vmatpush1.bf16.msra.mxu0 0
    %214 = vmatprep.subr.bf16.mxu0 0
    %215 = vmatpush1.bf16.msra.mxu0 0
    %216 = vmatprep.subr.bf16.mxu0 0
    %217 = vmatpush1.bf16.msra.mxu0 0
    %218 = vmatprep.subr.bf16.mxu0 0
    %219 = vmatpush1.bf16.msra.mxu0 0
    %220 = vmatprep.subr.bf16.mxu0 0
    %221 = vmatpush1.bf16.msra.mxu0 0
    %222 = vmatprep.subr.bf16.mxu0 0
    %223 = vmatpush1.bf16.msra.mxu0 0
    %224 = vmatprep.subr.bf16.mxu0 0
    %225 = vmatpush1.bf16.msra.mxu0 %v208
    %226 = vmatprep.subr.bf16.mxu0 0
    %227 = vmatpush2.bf16.msra.mxu0 0
    %228 = vmatprep.subr.bf16.mxu0 0
    %229 = vmatpush2.bf16.msra.mxu0 0
    %230 = vmatprep.subr.bf16.mxu0 0
    %231 = vmatpush2.bf16.msra.mxu0 0
    %232 = vmatprep.subr.bf16.mxu0 0
    %233 = vmatpush2.bf16.msra.mxu0 0
    %234 = vmatprep.subr.bf16.mxu0 0
    %235 = vmatpush2.bf16.msra.mxu0 0
    %236 = vmatprep.subr.bf16.mxu0 0
    %237 = vmatpush2.bf16.msra.mxu0 0
    %238 = vmatprep.subr.bf16.mxu0 0
    %239 = vmatpush2.bf16.msra.mxu0 0
    %240 = vmatprep.subr.bf16.mxu0 0
    %241 = vmatpush2.bf16.msra.mxu0 0
    %242 = vmatprep.mubr.bf16.mxu0 0
    %243 = vmatmul.mubr.bf16.gmra.mxu0 %v202
    %v244 = vpop.f32.mrf.mxu0
    %v245 = vadd.f32 %v174, %v244
    %v246 = vpop.f32.mrf.mxu0
    %v247 = vpop.f32.mrf.mxu0
    %v248 = vadd.f32 %v179, %v247
    %v249 = vpop.f32.mrf.mxu0
    %250 = vmatprep.mubr.bf16.mxu0 0
    %251 = vmatmul.mubr.bf16.gmra.mxu0 %v205
    %v252 = vpop.f32.mrf.mxu0
    %v253 = vadd.f32 %v184, %v252
    %v254 = vpop.f32.mrf.mxu0
    %v255 = vpop.f32.mrf.mxu0
    %v256 = vadd.f32 %v189, %v255
    %v257 = vpop.f32.mrf.mxu0
    %258 = vdwg.mxu0
    %v259 = vmax.f32 %v245, 0.0
    %v260 = vmax.f32 %v248, 0.0
    %v261 = vmax.f32 %v253, 0.0
    %v262 = vmax.f32 %v256, 0.0
    %v263 = vld [vmem:[%s7] sm:$0xf]
    %v264 = vld [vmem:[%s7 + $0x4] sm:$0xf]
    %v265 = vld [vmem:[%s7 + $0x8] sm:$0xf]
    %v266 = vld [vmem:[%s7 + $0xc] sm:$0xf]
    %v267 = vpack.c.bf16 %v260, %v259
    %v268 = vpack.c.bf16 %v262, %v261
    %v269 = vld [vmem:[%s8] sm:$0xff]
    %v270 = vld [vmem:[%s8 + $0x8] sm:$0xff]
    %v271 = vld [vmem:[%s8 + $0x10] sm:$0xff]
    %v272 = vld [vmem:[%s8 + $0x18] sm:$0xff]
    %274 = vset.pattern.permute.xlu0 0
    %275 = vperm.xlu0 %274, %v269
    %v276 = vpop.permute.xlu0 %275
    %279 = vset.pattern.permute.xlu0 0
    %280 = vperm.xlu0 %279, %v270
    %v281 = vpop.permute.xlu0 %280
    %284 = vset.pattern.permute.xlu0 0
    %285 = vperm.xlu0 %284, %v271
    %v286 = vpop.permute.xlu0 %285
    %289 = vset.pattern.permute.xlu0 0
    %290 = vperm.xlu0 %289, %v272
    %v291 = vpop.permute.xlu0 %290
    %v297 = vunpack.c.l.b16 %v263
    %v298 = vunpack.c.l.b16 %v264
    %v299 = vunpack.c.l.b16 %v265
    %v300 = vunpack.c.l.b16 %v266
    %v301 = vpack.c.b16 %v298, %v297
    %v302 = vpack.c.b16 %v300, %v299
    %vm303 = vcmask 261120
    %v305 = vsel %vm303, %v301, 0
    %v308 = vsel %vm303, %v302, 0
    %310 = vmatprep.subr.bf16.mxu0 0
    %311 = vmatpush1.bf16.msra.mxu0 0
    %312 = vmatprep.subr.bf16.mxu0 0
    %313 = vmatpush1.bf16.msra.mxu0 0
    %314 = vmatprep.subr.bf16.mxu0 0
    %315 = vmatpush1.bf16.msra.mxu0 0
    %316 = vmatprep.subr.bf16.mxu0 0
    %317 = vmatpush1.bf16.msra.mxu0 0
    %318 = vmatprep.subr.bf16.mxu0 0
    %319 = vmatpush1.bf16.msra.mxu0 0
    %320 = vmatprep.subr.bf16.mxu0 0
    %321 = vmatpush1.bf16.msra.mxu0 0
    %322 = vmatprep.subr.bf16.mxu0 0
    %323 = vmatpush1.bf16.msra.mxu0 %v268
    %324 = vmatprep.subr.bf16.mxu0 0
    %325 = vmatpush1.bf16.msra.mxu0 %v267
    %326 = vmatprep.subr.bf16.mxu0 0
    %327 = vmatpush2.bf16.msra.mxu0 0
    %328 = vmatprep.subr.bf16.mxu0 0
    %329 = vmatpush2.bf16.msra.mxu0 0
    %330 = vmatprep.subr.bf16.mxu0 0
    %331 = vmatpush2.bf16.msra.mxu0 0
    %332 = vmatprep.subr.bf16.mxu0 0
    %333 = vmatpush2.bf16.msra.mxu0 0
    %334 = vmatprep.subr.bf16.mxu0 0
    %335 = vmatpush2.bf16.msra.mxu0 0
    %336 = vmatprep.subr.bf16.mxu0 0
    %337 = vmatpush2.bf16.msra.mxu0 0
    %338 = vmatprep.subr.bf16.mxu0 0
    %339 = vmatpush2.bf16.msra.mxu0 0
    %340 = vmatprep.subr.bf16.mxu0 0
    %341 = vmatpush2.bf16.msra.mxu0 0
    %342 = vmatprep.mubr.bf16.mxu0 0
    %343 = vmatmul.mubr.bf16.gmra.mxu0 %v305
    %v344 = vpop.f32.mrf.mxu0
    %v345 = vadd.f32 %v276, %v344
    %v346 = vpop.f32.mrf.mxu0
    %v347 = vpop.f32.mrf.mxu0
    %v348 = vadd.f32 %v281, %v347
    %v349 = vpop.f32.mrf.mxu0
    %350 = vmatprep.mubr.bf16.mxu0 0
    %351 = vmatmul.mubr.bf16.gmra.mxu0 %v308
    %v352 = vpop.f32.mrf.mxu0
    %v353 = vadd.f32 %v286, %v352
    %v354 = vpop.f32.mrf.mxu0
    %v355 = vpop.f32.mrf.mxu0
    %v356 = vadd.f32 %v291, %v355
    %v357 = vpop.f32.mrf.mxu0
    %358 = vdwg.mxu0
    %v359 = vmax.f32 %v345, 0.0
    %v360 = vmax.f32 %v348, 0.0
    %v361 = vmax.f32 %v353, 0.0
    %v362 = vmax.f32 %v356, 0.0
    %v363 = vld [vmem:[%s9] sm:$0xf]
    %v364 = vld [vmem:[%s9 + $0x4] sm:$0xf]
    %v365 = vpack.c.bf16 %v360, %v359
    %v366 = vpack.c.bf16 %v362, %v361
    %v367 = vld [vmem:[%s10] sm:$0xff]
    %v368 = vld [vmem:[%s10 + $0x8] sm:$0xff]
    %370 = vset.pattern.permute.xlu0 0
    %371 = vperm.xlu0 %370, %v367
    %v372 = vpop.permute.xlu0 %371
    %375 = vset.pattern.permute.xlu0 0
    %376 = vperm.xlu0 %375, %v368
    %v377 = vpop.permute.xlu0 %376
    %v381 = vunpack.c.l.b16 %v363
    %v382 = vunpack.c.l.b16 %v364
    %v383 = vpack.c.b16 %v382, %v381
    %v385 = vsel %vm303, %v383, 0
    %387 = vmatprep.subr.bf16.mxu0 0
    %388 = vmatpush1.bf16.msra.mxu0 0
    %389 = vmatprep.subr.bf16.mxu0 0
    %390 = vmatpush1.bf16.msra.mxu0 0
    %391 = vmatprep.subr.bf16.mxu0 0
    %392 = vmatpush1.bf16.msra.mxu0 0
    %393 = vmatprep.subr.bf16.mxu0 0
    %394 = vmatpush1.bf16.msra.mxu0 0
    %395 = vmatprep.subr.bf16.mxu0 0
    %396 = vmatpush1.bf16.msra.mxu0 0
    %397 = vmatprep.subr.bf16.mxu0 0
    %398 = vmatpush1.bf16.msra.mxu0 0
    %399 = vmatprep.subr.bf16.mxu0 0
    %400 = vmatpush1.bf16.msra.mxu0 %v366
    %401 = vmatprep.subr.bf16.mxu0 0
    %402 = vmatpush1.bf16.msra.mxu0 %v365
    %403 = vmatprep.subr.bf16.mxu0 0
    %404 = vmatpush2.bf16.msra.mxu0 0
    %405 = vmatprep.subr.bf16.mxu0 0
    %406 = vmatpush2.bf16.msra.mxu0 0
    %407 = vmatprep.subr.bf16.mxu0 0
    %408 = vmatpush2.bf16.msra.mxu0 0
    %409 = vmatprep.subr.bf16.mxu0 0
    %410 = vmatpush2.bf16.msra.mxu0 0
    %411 = vmatprep.subr.bf16.mxu0 0
    %412 = vmatpush2.bf16.msra.mxu0 0
    %413 = vmatprep.subr.bf16.mxu0 0
    %414 = vmatpush2.bf16.msra.mxu0 0
    %415 = vmatprep.subr.bf16.mxu0 0
    %416 = vmatpush2.bf16.msra.mxu0 0
    %417 = vmatprep.subr.bf16.mxu0 0
    %418 = vmatpush2.bf16.msra.mxu0 0
    %419 = vmatprep.mubr.bf16.mxu0 0
    %420 = vmatmul.mubr.bf16.gmra.mxu0 %v385
    %v421 = vpop.f32.mrf.mxu0
    %v422 = vadd.f32 %v372, %v421
    %v423 = vpop.f32.mrf.mxu0
    %v424 = vpop.f32.mrf.mxu0
    %v425 = vadd.f32 %v377, %v424
    %v426 = vpop.f32.mrf.mxu0
    %427 = vdwg.mxu0
    %vm428 = vcmask 490496
    %429 = vst.msk [vmem:[#allocation2] sm:$0xff] %vm428, %v422
    %430 = vst.msk [vmem:[#allocation2 + $0x8] sm:$0xff] %vm428, %v425
    // Predicated region
    $region46: #{quantum_enhanced_forward.1} parent=1 // pred_check
      _
    $region47: #{quantum_enhanced_forward.1} parent=1 // pred_check_branch
      %432 = sbr.rel (0) target = $region49
    $region48: #{quantum_enhanced_forward.1} parent=1 // pred_region
      %s434 = ssub.s32 256, 256
      %435 = vsyncadd [#allocation3], %s434
      %s436 = sshll.u32 [#allocation2], 4
      %s437 = int_to_ptr.vmem [resolvable:$true] %s436
      %442 = dma.vmem_to_hbm [thread:$0]  %s437, 256, %s11, [#allocation3], 128, 128, 8
    $region49: #{quantum_enhanced_forward.1} parent=1 // pred_fallthru
      _
    // Predicated region
    $region50: #{quantum_enhanced_forward.1} parent=1 // pred_check
      _
    $region51: #{quantum_enhanced_forward.1} parent=1 // pred_check_branch
      %444 = sbr.rel (0) target = $region53
    $region52: #{quantum_enhanced_forward.1} parent=1 // pred_region
      %445 = dma.done [#allocation3], 256
    $region53: #{quantum_enhanced_forward.1} parent=1 // pred_fallthru
      _
    %446 = vsyncpa [#allocation3], 1

</llo_original>
